<compile_context>
chip_gen: v6e
topology: v6e:2x2x1
jax: 0.10.0
libtpu: 0.0.40
codegen_flags: <defaults>
</compile_context>

<pallas_src>
import functools
import math

import jax
import jax.numpy as jnp
from jax import lax
from jax.experimental import pallas as pl
from jax.experimental.pallas import tpu as pltpu


def _attn_kernel(q_ref, k_ref, v_ref, out_ref, attn_ref, logattn_ref, *,
                 inv_temperature, scale_scores):
    # Block shapes: q (BT, TQ, D), k (BT, Lk, D), v (BT, Lk, Dv).
    q = q_ref[...]
    k = k_ref[...]
    if not scale_scores:
        # Fold 1/temperature into q (TQ*D multiplies < TQ*Lk multiplies).
        q = q * inv_temperature

    # scores = q @ k^T : contract D directly (trans-B) -- no k transpose.
    # Operands stay in their native dtype (bf16 is single-pass on the MXU),
    # accumulation in f32.
    s = lax.dot_general(
        q, k,
        dimension_numbers=(((2,), (2,)), ((0,), (0,))),
        preferred_element_type=jnp.float32,
    )                                                        # (BT, TQ, Lk) f32
    if scale_scores:
        s = s * inv_temperature

    # Numerically stable softmax / log_softmax with a single exp pass.
    m = jnp.max(s, axis=-1, keepdims=True)
    p = jnp.exp(s - m)                                       # one EUP pass
    denom = jnp.sum(p, axis=-1, keepdims=True)
    attn = p * pl.reciprocal(denom)                          # VALU broadcast-mul
    log_attn = (s - m) - jnp.log(denom)

    # output = attn @ v.  attn kept f32 (matches the f32 reference even when v
    # is bf16); v upcast for the contraction.
    out = lax.dot_general(
        attn, v_ref[...].astype(jnp.float32),
        dimension_numbers=(((2,), (1,)), ((0,), (0,))),
        preferred_element_type=jnp.float32,
    )                                                        # (BT, TQ, Dv)

    out_ref[...] = out.astype(out_ref.dtype)
    attn_ref[...] = attn.astype(attn_ref.dtype)
    logattn_ref[...] = log_attn.astype(logattn_ref.dtype)


def _vmem_limits():
    """Generation-aware scoped-VMEM limit and tiler budget."""
    cap = None
    try:
        cap = getattr(pltpu.get_tpu_info(), "vmem_capacity_bytes", None)
    except Exception:
        cap = None
    if not cap:
        cap = 64 * 1024 * 1024            # conservative fallback (v7x per-core VMEM)
    limit = min(cap * 3 // 4, 100 * 1024 * 1024)   # explicit scoped limit we request
    budget = limit * 4 // 5                         # tiler target, headroom for spills
    return int(limit), int(budget)


def _round8(x):
    return max(8, ((x + 7) // 8) * 8)


def _choose_tiles(B, Lq, Lk, D, Dv, in_bytes, out_bytes, probs_bytes,
                  budget_bytes, hard_bytes):
    """Pick (BT, TQ): batch elements per step and query rows per step."""

    def working_set(bt, tq):
        bufs = 2 * bt * (tq * D * in_bytes             # q tile (double-buffered)
                         + Lk * (D + Dv) * in_bytes    # k, v tiles
                         + tq * Dv * out_bytes         # out tile
                         + 2 * tq * Lk * probs_bytes)  # attn + log_attn tiles
        temps = 2 * bt * tq * Lk * 4                   # f32 scores + exp temporaries
        return bufs + temps

    # Query tiling: keep M = TQ at the MXU height (128) or full Lq if smaller;
    # shrinking below that leaves MXU rows idle for both matmuls.
    tq_floor = min(Lq, 128)
    TQ = min(Lq, 512)
    while TQ > tq_floor and working_set(1, TQ) > budget_bytes:
        TQ = max(tq_floor, _round8(TQ // 2))
    # Last-resort escape so we never exceed the scoped limit outright.
    # TODO(synk): replace with a kv-tiled (flash-style) grid axis for long Lk.
    while TQ > 8 and working_set(1, TQ) > hard_bytes:
        TQ = _round8(TQ // 2)

    # Batch tiny problems per grid step to fill sublanes / amortize step cost.
    BT = 1
    while (BT < B and TQ == Lq and BT * TQ < 256
           and working_set(BT * 2, TQ) <= budget_bytes):
        BT *= 2
    BT = min(BT, B)

    # Keep >= 2 grid steps whenever possible so both v7x TensorCores get work.
    if B >= 2 and pl.cdiv(B, BT) * pl.cdiv(Lq, TQ) < 2:
        BT = pl.cdiv(B, 2)
    return BT, TQ


def scaled_dot_product_attention(q, k, v, temperature, *, probs_dtype=jnp.float32):
    B, Lq, D = q.shape
    Bk, Lk, Dk = k.shape
    Bv, Lkv, Dv = v.shape
    assert (Bk, Dk) == (B, D) and (Bv, Lkv) == (B, Lk)

    out_dtype = q.dtype
    in_bytes = jnp.dtype(q.dtype).itemsize
    out_bytes = jnp.dtype(out_dtype).itemsize
    probs_bytes = jnp.dtype(probs_dtype).itemsize

    vmem_limit, budget = _vmem_limits()
    BT, TQ = _choose_tiles(B, Lq, Lk, D, Dv, in_bytes, out_bytes, probs_bytes,
                           budget, int(vmem_limit * 0.9))

    # Apply 1/temperature to whichever tile is smaller: q (TQ*D) or scores (TQ*Lk).
    scale_scores = Lk < D

    kernel = functools.partial(
        _attn_kernel,
        inv_temperature=1.0 / float(temperature),
        scale_scores=scale_scores)

    grid = (pl.cdiv(B, BT), pl.cdiv(Lq, TQ))

    in_specs = [
        pl.BlockSpec((BT, TQ, D), lambda b, qi: (b, qi, 0)),   # q
        # k / v are resident across the inner qi axis (block index fixed at 0).
        # TODO(synk): pipeline_mode=pl.Buffered(1) would drop their second VMEM
        # buffer (they only change with the outer batch step).
        pl.BlockSpec((BT, Lk, D), lambda b, qi: (b, 0, 0)),    # k
        pl.BlockSpec((BT, Lk, Dv), lambda b, qi: (b, 0, 0)),   # v
    ]
    # TODO(synk): fold rows into the lane dim for unmasked (lane-dense) stores
    # when Lk / Dv are not multiples of 128.
    out_specs = (
        pl.BlockSpec((BT, TQ, Dv), lambda b, qi: (b, qi, 0)),  # output
        pl.BlockSpec((BT, TQ, Lk), lambda b, qi: (b, qi, 0)),  # attn
        pl.BlockSpec((BT, TQ, Lk), lambda b, qi: (b, qi, 0)),  # log_attn
    )

    out_shapes = (
        jax.ShapeDtypeStruct((B, Lq, Dv), out_dtype),
        jax.ShapeDtypeStruct((B, Lq, Lk), probs_dtype),
        jax.ShapeDtypeStruct((B, Lq, Lk), probs_dtype),
    )

    cost = pl.CostEstimate(
        flops=2 * B * Lq * Lk * (D + Dv),
        transcendentals=B * Lq * Lk,
        bytes_accessed=(B * Lq * D + B * Lk * D + B * Lk * Dv) * in_bytes
                        + B * Lq * Dv * out_bytes
                        + 2 * B * Lq * Lk * probs_bytes,
    )

    return pl.pallas_call(
        kernel,
        out_shape=out_shapes,
        grid=grid,
        in_specs=in_specs,
        out_specs=out_specs,
        compiler_params=pltpu.CompilerParams(
            dimension_semantics=("parallel", "parallel"),
            vmem_limit_bytes=vmem_limit),
        cost_estimate=cost,
    )(q, k, v)


def _reference(q, k, v, temperature):
    scores = jnp.einsum("bqd,bkd->bqk", q.astype(jnp.float32),
                        k.astype(jnp.float32)) / temperature
    log_attn = jax.nn.log_softmax(scores, axis=2)
    attn = jax.nn.softmax(scores, axis=2)
    out = jnp.einsum("bqk,bkd->bqd", attn, v.astype(jnp.float32))
    return out.astype(q.dtype), attn, log_attn


if __name__ == "__main__":
    key = jax.random.PRNGKey(0)
    kq, kk, kv = jax.random.split(key, 3)

    # small shapes: batch=2, seq=8, head dim=32
    B, Lq, Lk, D = 2, 8, 8, 32
    temperature = math.sqrt(D)  # standard scaling, matches typical module init

    q = jax.random.normal(kq, (B, Lq, D), dtype=jnp.float32)
    k = jax.random.normal(kk, (B, Lk, D), dtype=jnp.float32)
    v = jax.random.normal(kv, (B, Lk, D), dtype=jnp.float32)

    out, attn, log_attn = scaled_dot_product_attention(q, k, v, temperature)
    jax.block_until_ready((out, attn, log_attn))

    out_r, attn_r, log_attn_r = _reference(q, k, v, temperature)
    assert jnp.allclose(out, out_r, atol=1e-4, rtol=1e-4), "output mismatch"
    assert jnp.allclose(attn, attn_r, atol=1e-5, rtol=1e-5), "attn mismatch"
    assert jnp.allclose(log_attn, log_attn_r, atol=1e-5, rtol=1e-5), "log_attn mismatch"

    print("KERNEL_OK")
</pallas_src>

<mosaic_0001>
module attributes {stable_mosaic.version = 11 : i64} {
  func.func @_attn_kernel(%arg0: i32, %arg1: i32, %arg2: memref<1x8x32xf32, #tpu.memory_space<vmem>>, %arg3: memref<1x8x32xf32, #tpu.memory_space<vmem>>, %arg4: memref<1x8x32xf32, #tpu.memory_space<vmem>>, %arg5: memref<1x8x32xf32, #tpu.memory_space<vmem>>, %arg6: memref<1x8x8xf32, #tpu.memory_space<vmem>>, %arg7: memref<1x8x8xf32, #tpu.memory_space<vmem>>) attributes {dimension_semantics = [#tpu.dimension_semantics<parallel>, #tpu.dimension_semantics<parallel>], iteration_bounds = array<i64: 2, 1>, scalar_prefetch = 0 : i64, scratch_operands = 0 : i64, tpu.core_type = #tpu.core_type<tc>, window_params = [{transform_indices = @transform_0, window_bounds = array<i64: 1, 8, 32>}, {transform_indices = @transform_1, window_bounds = array<i64: 1, 8, 32>}, {transform_indices = @transform_2, window_bounds = array<i64: 1, 8, 32>}, {transform_indices = @transform_3, window_bounds = array<i64: 1, 8, 32>}, {transform_indices = @transform_4, window_bounds = array<i64: 1, 8, 8>}, {transform_indices = @transform_5, window_bounds = array<i64: 1, 8, 8>}]} {
    %c0 = arith.constant 0 : index
    %c0_0 = arith.constant 0 : index
    %c0_1 = arith.constant 0 : index
    %0 = vector.load %arg2[%c0, %c0_0, %c0_1] : memref<1x8x32xf32, #tpu.memory_space<vmem>>, vector<1x8x32xf32>
    %c0_2 = arith.constant 0 : index
    %c0_3 = arith.constant 0 : index
    %c0_4 = arith.constant 0 : index
    %1 = vector.load %arg3[%c0_2, %c0_3, %c0_4] : memref<1x8x32xf32, #tpu.memory_space<vmem>>, vector<1x8x32xf32>
    %cst = arith.constant dense<0.000000e+00> : vector<1x8x8xf32>
    %2 = tpu.matmul %0, %1, %cst {dimension_numbers = #tpu.dot_dimension_numbers<[2], [2], [1], [1], [0, 0, 0, 1, 1, 1], [0], [0]>} : vector<1x8x32xf32>, vector<1x8x32xf32>, vector<1x8x8xf32> -> vector<1x8x8xf32>
    %cst_5 = arith.constant 0.176776692 : f32
    %3 = vector.broadcast %cst_5 : f32 to vector<1x8x8xf32>
    %4 = arith.mulf %2, %3 : vector<1x8x8xf32>
    %cst_6 = arith.constant dense<0xFF800000> : vector<1x8xf32>
    %5 = vector.multi_reduction <maximumf>, %4, %cst_6 [2] : vector<1x8x8xf32> to vector<1x8xf32>
    %6 = vector.shape_cast %5 : vector<1x8xf32> to vector<1x8x1xf32>
    %7 = vector.broadcast %6 : vector<1x8x1xf32> to vector<1x8x8xf32>
    %8 = arith.subf %4, %7 : vector<1x8x8xf32>
    %9 = math.exp %8 : vector<1x8x8xf32>
    %cst_7 = arith.constant dense<0.000000e+00> : vector<1x8xf32>
    %10 = vector.multi_reduction <add>, %9, %cst_7 [2] : vector<1x8x8xf32> to vector<1x8xf32>
    %11 = vector.shape_cast %10 : vector<1x8xf32> to vector<1x8x1xf32>
    %12 = tpu.reciprocal %11 : vector<1x8x1xf32> -> vector<1x8x1xf32>
    %13 = vector.broadcast %12 : vector<1x8x1xf32> to vector<1x8x8xf32>
    %14 = arith.mulf %9, %13 : vector<1x8x8xf32>
    %15 = vector.broadcast %6 : vector<1x8x1xf32> to vector<1x8x8xf32>
    %16 = arith.subf %4, %15 : vector<1x8x8xf32>
    %17 = math.log %11 : vector<1x8x1xf32>
    %18 = vector.broadcast %17 : vector<1x8x1xf32> to vector<1x8x8xf32>
    %19 = arith.subf %16, %18 : vector<1x8x8xf32>
    %c0_8 = arith.constant 0 : index
    %c0_9 = arith.constant 0 : index
    %c0_10 = arith.constant 0 : index
    %20 = vector.load %arg4[%c0_8, %c0_9, %c0_10] : memref<1x8x32xf32, #tpu.memory_space<vmem>>, vector<1x8x32xf32>
    %cst_11 = arith.constant dense<0.000000e+00> : vector<1x8x32xf32>
    %21 = tpu.matmul %14, %20, %cst_11 {dimension_numbers = #tpu.dot_dimension_numbers<[2], [1], [1], [2], [0, 0, 0, 1, 1, 2], [0], [0]>} : vector<1x8x8xf32>, vector<1x8x32xf32>, vector<1x8x32xf32> -> vector<1x8x32xf32>
    %c0_12 = arith.constant 0 : index
    %c0_13 = arith.constant 0 : index
    %c0_14 = arith.constant 0 : index
    %22 = vector.load %arg5[%c0_12, %c0_13, %c0_14] : memref<1x8x32xf32, #tpu.memory_space<vmem>>, vector<1x8x32xf32>
    tpu.vector_store %arg5[%c0_12, %c0_13, %c0_14], %21 {strides = array<i32>} : memref<1x8x32xf32, #tpu.memory_space<vmem>>, vector<1x8x32xf32>,
    %c0_15 = arith.constant 0 : index
    %c0_16 = arith.constant 0 : index
    %c0_17 = arith.constant 0 : index
    %23 = vector.load %arg6[%c0_15, %c0_16, %c0_17] : memref<1x8x8xf32, #tpu.memory_space<vmem>>, vector<1x8x8xf32>
    tpu.vector_store %arg6[%c0_15, %c0_16, %c0_17], %14 {strides = array<i32>} : memref<1x8x8xf32, #tpu.memory_space<vmem>>, vector<1x8x8xf32>,
    %c0_18 = arith.constant 0 : index
    %c0_19 = arith.constant 0 : index
    %c0_20 = arith.constant 0 : index
    %24 = vector.load %arg7[%c0_18, %c0_19, %c0_20] : memref<1x8x8xf32, #tpu.memory_space<vmem>>, vector<1x8x8xf32>
    tpu.vector_store %arg7[%c0_18, %c0_19, %c0_20], %19 {strides = array<i32>} : memref<1x8x8xf32, #tpu.memory_space<vmem>>, vector<1x8x8xf32>,
    return
  }
  func.func @transform_0(%arg0: i32, %arg1: i32) -> (i32, i32, i32) {
    %c0_i32 = arith.constant 0 : i32
    %c0_i32_0 = arith.constant 0 : i32
    return %arg0, %arg1, %c0_i32 : i32, i32, i32
  }
  func.func @transform_1(%arg0: i32, %arg1: i32) -> (i32, i32, i32) {
    %c0_i32 = arith.constant 0 : i32
    %c0_i32_0 = arith.constant 0 : i32
    %c0_i32_1 = arith.constant 0 : i32
    return %arg0, %c0_i32, %c0_i32_0 : i32, i32, i32
  }
  func.func @transform_2(%arg0: i32, %arg1: i32) -> (i32, i32, i32) {
    %c0_i32 = arith.constant 0 : i32
    %c0_i32_0 = arith.constant 0 : i32
    %c0_i32_1 = arith.constant 0 : i32
    return %arg0, %c0_i32, %c0_i32_0 : i32, i32, i32
  }
  func.func @transform_3(%arg0: i32, %arg1: i32) -> (i32, i32, i32) {
    %c0_i32 = arith.constant 0 : i32
    %c0_i32_0 = arith.constant 0 : i32
    return %arg0, %arg1, %c0_i32 : i32, i32, i32
  }
  func.func @transform_4(%arg0: i32, %arg1: i32) -> (i32, i32, i32) {
    %c0_i32 = arith.constant 0 : i32
    %c0_i32_0 = arith.constant 0 : i32
    return %arg0, %arg1, %c0_i32 : i32, i32, i32
  }
  func.func @transform_5(%arg0: i32, %arg1: i32) -> (i32, i32, i32) {
    %c0_i32 = arith.constant 0 : i32
    %c0_i32_0 = arith.constant 0 : i32
    return %arg0, %arg1, %c0_i32 : i32, i32, i32
  }
}

</mosaic_0001>

<llo_original>
// kernel: tpu_custom_call.1
$region0: #{tpu_custom_call.1}
  #allocation0 [shape = 'u32[]', space=smem, size = 0x4, offset = 0x4, fixed_abs, tag = 'smem constant byte address 0x4 - core index']
  #allocation1 [shape = 'u32[144,128]{1,0:T(1,128)}', space=vmem, size = 0x12000, scoped, tag = 'internal scratch']
  %s0 = inlined_call_operand.hbm [shape: f32[2,8,32], index: 0, kind: input, shape index: {}]
  %s1 = inlined_call_operand.hbm [shape: f32[2,8,32], index: 1, kind: input, shape index: {}]
  %s2 = inlined_call_operand.hbm [shape: f32[2,8,32], index: 2, kind: input, shape index: {}]
  %s3 = inlined_call_operand.hbm [shape: f32[2,8,32], index: 3, kind: output, shape index: {0}]
  %s4 = inlined_call_operand.hbm [shape: f32[2,8,8], index: 4, kind: output, shape index: {1}]
  %s5 = inlined_call_operand.hbm [shape: f32[2,8,8], index: 5, kind: output, shape index: {2}]
  %6 = xla_tuple %s3, %s4, %s5
  %s7 = sld [smem:[#allocation0]]
  $region73: #{tpu_custom_call.1} parent=0
    _
  %s9 = ssub.s32 1, %s7
  %s10 = scalar_select 0, %s9, %s7
  $region1: #{tpu_custom_call.1} parent=0
    #allocation2 [shape = 'u8[8192]{0}', space=vmem, size = 0x2000, scoped, tag = 'input window, operand 0']
    #allocation3 [shape = 's32[2]{0}', space=sflag, size = 0x8, scoped, tag = 'scoped memory for tpu_custom_call.1']
    #allocation4 [shape = 's32[2]{0}', space=sflag, size = 0x8, scoped, tag = 'scoped memory for tpu_custom_call.1']
    #allocation5 [shape = 'u8[8192]{0}', space=vmem, size = 0x2000, scoped, tag = 'input window, operand 1']
    #allocation6 [shape = 's32[2]{0}', space=sflag, size = 0x8, scoped, tag = 'scoped memory for tpu_custom_call.1']
    #allocation7 [shape = 'u8[8192]{0}', space=vmem, size = 0x2000, scoped, tag = 'input window, operand 2']
    #allocation8 [shape = 'u8[8192]{0}', space=vmem, size = 0x2000, scoped, tag = 'output window, operand 0']
    #allocation9 [shape = 'u8[8192]{0}', space=vmem, size = 0x2000, scoped, tag = 'output window, operand 1']
    #allocation10 [shape = 's32[2]{0}', space=sflag, size = 0x8, scoped, tag = 'scoped memory for tpu_custom_call.1']
    #allocation11 [shape = 'u8[8192]{0}', space=vmem, size = 0x2000, scoped, tag = 'output window, operand 2']
    %11 = vsyncpa [#allocation3], 0
    %s12 = scalar_lea.sflag [#allocation3], 1
    %13 = vsyncpa %s12, 0
    %14 = vsyncpa [#allocation6], 0
    %s15 = scalar_lea.sflag [#allocation6], 1
    %16 = vsyncpa %s15, 0
    %17 = vsyncpa [#allocation4], 0
    %s18 = scalar_lea.sflag [#allocation4], 1
    %19 = vsyncpa %s18, 0
    %20 = vsyncpa [#allocation10], 0
    %s21 = scalar_lea.sflag [#allocation10], 1
    %22 = vsyncpa %s21, 0
    loop: start=0, step=1, limit=4
    $region2: #{tpu_custom_call.1} parent=1 // loop_pre_header
      _
    $region3: #{tpu_custom_call.1} parent=1 // loop_header
      %s24 = sphi 0, %s28
      %p25 = scmp.ge.s32.totalorder %s24, 4
      %s31 = sphi 0, %s43
      %s32 = sphi 0, %s39
      %s33 = sphi 0, %s31
      %s34 = sphi 0, %s32
      %s35 = sphi 0, %s33
      %s36 = sphi 0, %s34
      %s48 = sphi 0, %s50
      %s51 = sphi 0, %s48
      %s52 = sphi 0, %s51
      %s68 = sphi 0, %s52
      %s74 = sphi 0, %s76
      %s77 = sphi 0, %s74
      %s78 = sphi 0, %s77
      %s94 = sphi 0, %s78
      %s100 = sphi 0, %s102
      %s103 = sphi 0, %s100
      %s104 = sphi 0, %s103
      %s120 = sphi 0, %s104
      %s128 = sphi 0, %s130
      %s131 = sphi 0, %s128
      %s132 = sphi 0, %s131
      %s148 = sphi 0, %s132
      %s156 = sphi 0, %s158
      %s159 = sphi 0, %s156
      %s160 = sphi 0, %s159
      %s176 = sphi 0, %s160
      %s184 = sphi 0, %s186
      %s187 = sphi 0, %s184
      %s188 = sphi 0, %s187
      %s204 = sphi 0, %s188
    $region4: #{tpu_custom_call.1} parent=1 // loop_header_branch
      %27 = sbr.rel (%p25) target = $region8
    $region5: #{tpu_custom_call.1} parent=1 // loop_body
      %s29 = ssub.s32 %s24, 1
      %s30 = ssub.s32 %s24, 2
      %s37 = sadd.s32 1, %s32
      %p38 = scmp.ge.s32.totalorder %s37, 1
      %s39 = scalar_select %p38, 0, %s37
      %s40 = sadd.s32 1, %s31
      %s41 = scalar_select %p38, %s40, %s31
      %p42 = scmp.ge.s32.totalorder %s41, 2
      %s43 = scalar_select %p42, 0, %s41
      %s44 = ssub.s32 %s31, %s43
      %s45 = ssub.s32 %s32, %s39
      %s46 = sor.u32 %s44, %s45
      %p47 = scmp.eq.s32.totalorder %s46, 0
      %s49 = sadd.s32 %s48, 1
      %s50 = scalar_select %p47, %s48, %s49
      %p53 = pneg %p47
      %p54 = scmp.eq.s32.totalorder %s24, 1
      %p55 = por %p53, %p54
      %p56 = scmp.ne.s32.totalorder %s48, %s51
      %p57 = scmp.eq.s32.totalorder %s24, 0
      %p58 = por %p56, %p57
      %p59 = scmp.ne.s32.totalorder %s48, %s51
      %p60 = scmp.eq.s32.totalorder %s29, 1
      %p61 = por %p59, %p60
      %p62 = scmp.ne.s32.totalorder %s51, %s52
      %p63 = scmp.eq.s32.totalorder %s29, 0
      %p64 = por %p62, %p63
      %p65 = scmp.ne.s32.totalorder %s51, %s52
      %p66 = scmp.eq.s32.totalorder %s30, 1
      %p67 = por %p65, %p66
      %p69 = scmp.ne.s32.totalorder %s52, %s68
      %p70 = scmp.eq.s32.totalorder %s30, 0
      %p71 = por %p69, %p70
      %s72 = ssub.s32 %s31, %s43
      %p73 = scmp.eq.s32.totalorder %s72, 0
      %s75 = sadd.s32 %s74, 1
      %s76 = scalar_select %p73, %s74, %s75
      %p79 = pneg %p73
      %p80 = scmp.eq.s32.totalorder %s24, 1
      %p81 = por %p79, %p80
      %p82 = scmp.ne.s32.totalorder %s74, %s77
      %p83 = scmp.eq.s32.totalorder %s24, 0
      %p84 = por %p82, %p83
      %p85 = scmp.ne.s32.totalorder %s74, %s77
      %p86 = scmp.eq.s32.totalorder %s29, 1
      %p87 = por %p85, %p86
      %p88 = scmp.ne.s32.totalorder %s77, %s78
      %p89 = scmp.eq.s32.totalorder %s29, 0
      %p90 = por %p88, %p89
      %p91 = scmp.ne.s32.totalorder %s77, %s78
      %p92 = scmp.eq.s32.totalorder %s30, 1
      %p93 = por %p91, %p92
      %p95 = scmp.ne.s32.totalorder %s78, %s94
      %p96 = scmp.eq.s32.totalorder %s30, 0
      %p97 = por %p95, %p96
      %s98 = ssub.s32 %s31, %s43
      %p99 = scmp.eq.s32.totalorder %s98, 0
      %s101 = sadd.s32 %s100, 1
      %s102 = scalar_select %p99, %s100, %s101
      %p105 = pneg %p99
      %p106 = scmp.eq.s32.totalorder %s24, 1
      %p107 = por %p105, %p106
      %p108 = scmp.ne.s32.totalorder %s100, %s103
      %p109 = scmp.eq.s32.totalorder %s24, 0
      %p110 = por %p108, %p109
      %p111 = scmp.ne.s32.totalorder %s100, %s103
      %p112 = scmp.eq.s32.totalorder %s29, 1
      %p113 = por %p111, %p112
      %p114 = scmp.ne.s32.totalorder %s103, %s104
      %p115 = scmp.eq.s32.totalorder %s29, 0
      %p116 = por %p114, %p115
      %p117 = scmp.ne.s32.totalorder %s103, %s104
      %p118 = scmp.eq.s32.totalorder %s30, 1
      %p119 = por %p117, %p118
      %p121 = scmp.ne.s32.totalorder %s104, %s120
      %p122 = scmp.eq.s32.totalorder %s30, 0
      %p123 = por %p121, %p122
      %s124 = ssub.s32 %s31, %s43
      %s125 = ssub.s32 %s32, %s39
      %s126 = sor.u32 %s124, %s125
      %p127 = scmp.eq.s32.totalorder %s126, 0
      %s129 = sadd.s32 %s128, 1
      %s130 = scalar_select %p127, %s128, %s129
      %p133 = pneg %p127
      %p134 = scmp.eq.s32.totalorder %s24, 1
      %p135 = por %p133, %p134
      %p136 = scmp.ne.s32.totalorder %s128, %s131
      %p137 = scmp.eq.s32.totalorder %s24, 0
      %p138 = por %p136, %p137
      %p139 = scmp.ne.s32.totalorder %s128, %s131
      %p140 = scmp.eq.s32.totalorder %s29, 1
      %p141 = por %p139, %p140
      %p142 = scmp.ne.s32.totalorder %s131, %s132
      %p143 = scmp.eq.s32.totalorder %s29, 0
      %p144 = por %p142, %p143
      %p145 = scmp.ne.s32.totalorder %s131, %s132
      %p146 = scmp.eq.s32.totalorder %s30, 1
      %p147 = por %p145, %p146
      %p149 = scmp.ne.s32.totalorder %s132, %s148
      %p150 = scmp.eq.s32.totalorder %s30, 0
      %p151 = por %p149, %p150
      %s152 = ssub.s32 %s31, %s43
      %s153 = ssub.s32 %s32, %s39
      %s154 = sor.u32 %s152, %s153
      %p155 = scmp.eq.s32.totalorder %s154, 0
      %s157 = sadd.s32 %s156, 1
      %s158 = scalar_select %p155, %s156, %s157
      %p161 = pneg %p155
      %p162 = scmp.eq.s32.totalorder %s24, 1
      %p163 = por %p161, %p162
      %p164 = scmp.ne.s32.totalorder %s156, %s159
      %p165 = scmp.eq.s32.totalorder %s24, 0
      %p166 = por %p164, %p165
      %p167 = scmp.ne.s32.totalorder %s156, %s159
      %p168 = scmp.eq.s32.totalorder %s29, 1
      %p169 = por %p167, %p168
      %p170 = scmp.ne.s32.totalorder %s159, %s160
      %p171 = scmp.eq.s32.totalorder %s29, 0
      %p172 = por %p170, %p171
      %p173 = scmp.ne.s32.totalorder %s159, %s160
      %p174 = scmp.eq.s32.totalorder %s30, 1
      %p175 = por %p173, %p174
      %p177 = scmp.ne.s32.totalorder %s160, %s176
      %p178 = scmp.eq.s32.totalorder %s30, 0
      %p179 = por %p177, %p178
      %s180 = ssub.s32 %s31, %s43
      %s181 = ssub.s32 %s32, %s39
      %s182 = sor.u32 %s180, %s181
      %p183 = scmp.eq.s32.totalorder %s182, 0
      %s185 = sadd.s32 %s184, 1
      %s186 = scalar_select %p183, %s184, %s185
      %p189 = pneg %p183
      %p190 = scmp.eq.s32.totalorder %s24, 1
      %p191 = por %p189, %p190
      %p192 = scmp.ne.s32.totalorder %s184, %s187
      %p193 = scmp.eq.s32.totalorder %s24, 0
      %p194 = por %p192, %p193
      %p195 = scmp.ne.s32.totalorder %s184, %s187
      %p196 = scmp.eq.s32.totalorder %s29, 1
      %p197 = por %p195, %p196
      %p198 = scmp.ne.s32.totalorder %s187, %s188
      %p199 = scmp.eq.s32.totalorder %s29, 0
      %p200 = por %p198, %p199
      %p201 = scmp.ne.s32.totalorder %s187, %s188
      %p202 = scmp.eq.s32.totalorder %s30, 1
      %p203 = por %p201, %p202
      %p205 = scmp.ne.s32.totalorder %s188, %s204
      %p206 = scmp.eq.s32.totalorder %s30, 0
      %p207 = por %p205, %p206
      %p208 = scmp.le.s32.totalorder 1, %s24
      %p209 = scmp.lt.s32.totalorder %s24, 3
      %p210 = pnand %p208, %p209
      %p211 = pneg %p210
      // Predicated region
      $region9: #{tpu_custom_call.1} parent=5 // pred_check
        _
      $region10: #{tpu_custom_call.1} parent=5 // pred_check_branch
        %213 = sbr.rel (%p210) target = $region12
      $region11: #{tpu_custom_call.1} parent=5 // pred_region
        %s214 = ssub.s32 %s24, 1
      $region12: #{tpu_custom_call.1} parent=5 // pred_fallthru
        _
      %p215 = scmp.lt.s32.totalorder %s24, 2
      // Predicated region
      $region13: #{tpu_custom_call.1} parent=5 // pred_check
        %p216 = pneg %p215
      $region14: #{tpu_custom_call.1} parent=5 // pred_check_branch
        %218 = sbr.rel (%p216) target = $region16
      $region15: #{tpu_custom_call.1} parent=5 // pred_region
        // Predicated region
        $region17: #{tpu_custom_call.1} parent=15 // pred_check
          %p219 = pneg %p58
        $region18: #{tpu_custom_call.1} parent=15 // pred_check_branch
          %221 = sbr.rel (%p219) target = $region20
        $region19: #{tpu_custom_call.1} parent=15 // pred_region
          %s222 = sand.u32 %s48, 1
          %s223 = scalar_lea.sflag [#allocation3], %s222
          %s224 = sand.u32 %s48, 1
          %s225 = smul.addr %s224, 8
          %s226 = scalar_lea.vmem [#allocation2], %s225
          %s228 = ssub.s32 128, 128
          %229 = vsyncadd %s223, %s228
          %s230 = sadd.s32 %s32, %s31
          %s231 = smul.addr %s230, 128
          %s232 = scalar_lea.hbm %s0, %s231
          %s234 = sshll.u32 %s226, 4
          %s235 = int_to_ptr.vmem [resolvable:$true] %s234
          %237 = dma.hbm_to_vmem [thread:$0]  %s232, 128, %s235, %s223
        $region20: #{tpu_custom_call.1} parent=15 // pred_fallthru
          _
        // Predicated region
        $region21: #{tpu_custom_call.1} parent=15 // pred_check
          %p238 = pneg %p84
        $region22: #{tpu_custom_call.1} parent=15 // pred_check_branch
          %240 = sbr.rel (%p238) target = $region24
        $region23: #{tpu_custom_call.1} parent=15 // pred_region
          %s241 = sand.u32 %s24, 1
          %s242 = scalar_lea.sflag [#allocation6], %s241
          %s243 = sand.u32 %s74, 1
          %s244 = smul.addr %s243, 8
          %s245 = scalar_lea.vmem [#allocation5], %s244
          %s247 = ssub.s32 128, 128
          %248 = vsyncadd %s242, %s247
          %s249 = smul.addr %s31, 128
          %s250 = scalar_lea.hbm %s1, %s249
          %s252 = sshll.u32 %s245, 4
          %s253 = int_to_ptr.vmem [resolvable:$true] %s252
          %255 = dma.hbm_to_vmem [thread:$0]  %s250, 128, %s253, %s242
        $region24: #{tpu_custom_call.1} parent=15 // pred_fallthru
          _
        // Predicated region
        $region25: #{tpu_custom_call.1} parent=15 // pred_check
          %p256 = pneg %p110
        $region26: #{tpu_custom_call.1} parent=15 // pred_check_branch
          %258 = sbr.rel (%p256) target = $region28
        $region27: #{tpu_custom_call.1} parent=15 // pred_region
          %s259 = sand.u32 %s24, 1
          %s260 = scalar_lea.sflag [#allocation6], %s259
          %s261 = sand.u32 %s100, 1
          %s262 = smul.addr %s261, 8
          %s263 = scalar_lea.vmem [#allocation7], %s262
          %s265 = ssub.s32 128, 128
          %266 = vsyncadd %s260, %s265
          %s267 = smul.addr %s31, 128
          %s268 = scalar_lea.hbm %s2, %s267
          %s270 = sshll.u32 %s263, 4
          %s271 = int_to_ptr.vmem [resolvable:$true] %s270
          %273 = dma.hbm_to_vmem [thread:$0]  %s268, 128, %s271, %s260
        $region28: #{tpu_custom_call.1} parent=15 // pred_fallthru
          _
      $region16: #{tpu_custom_call.1} parent=5 // pred_fallthru
        _
      %p274 = scmp.le.s32.totalorder 1, %s24
      %p275 = scmp.lt.s32.totalorder %s24, 3
      %p276 = pnand %p274, %p275
      %p277 = pneg %p276
      // Predicated region
      $region29: #{tpu_custom_call.1} parent=5 // pred_check
        _
      $region30: #{tpu_custom_call.1} parent=5 // pred_check_branch
        %279 = sbr.rel (%p276) target = $region32
      $region31: #{tpu_custom_call.1} parent=5 // pred_region
        %s280 = ssub.s32 %s24, 1
        %s281 = sand.u32 %s51, 1
        %s282 = scalar_lea.sflag [#allocation3], %s281
        %s283 = sand.u32 %s51, 1
        %s284 = smul.addr %s283, 8
        %s285 = scalar_lea.vmem [#allocation2], %s284
        // Predicated region
        $region33: #{tpu_custom_call.1} parent=31 // pred_check
          %p286 = pneg %p64
        $region34: #{tpu_custom_call.1} parent=31 // pred_check_branch
          %288 = sbr.rel (%p286) target = $region36
        $region35: #{tpu_custom_call.1} parent=31 // pred_region
          %289 = dma.done %s282, 128
        $region36: #{tpu_custom_call.1} parent=31 // pred_fallthru
          _
        %s290 = sand.u32 %s29, 1
        %s291 = scalar_lea.sflag [#allocation6], %s290
        %s292 = sand.u32 %s77, 1
        %s293 = smul.addr %s292, 8
        %s294 = scalar_lea.vmem [#allocation5], %s293
        // Predicated region
        $region37: #{tpu_custom_call.1} parent=31 // pred_check
          %p295 = pneg %p90
        $region38: #{tpu_custom_call.1} parent=31 // pred_check_branch
          %297 = sbr.rel (%p295) target = $region40
        $region39: #{tpu_custom_call.1} parent=31 // pred_region
          %298 = dma.done %s291, 128
        $region40: #{tpu_custom_call.1} parent=31 // pred_fallthru
          _
        %s299 = sand.u32 %s29, 1
        %s300 = scalar_lea.sflag [#allocation6], %s299
        %s301 = sand.u32 %s103, 1
        %s302 = smul.addr %s301, 8
        %s303 = scalar_lea.vmem [#allocation7], %s302
        // Predicated region
        $region41: #{tpu_custom_call.1} parent=31 // pred_check
          %p304 = pneg %p116
        $region42: #{tpu_custom_call.1} parent=31 // pred_check_branch
          %306 = sbr.rel (%p304) target = $region44
        $region43: #{tpu_custom_call.1} parent=31 // pred_region
          %307 = dma.done %s300, 128
        $region44: #{tpu_custom_call.1} parent=31 // pred_fallthru
          _
        %s308 = sand.u32 %s51, 1
        %s309 = scalar_lea.sflag [#allocation3], %s308
        %s310 = sand.u32 %s51, 1
        %s311 = smul.addr %s310, 8
        %s312 = scalar_lea.vmem [#allocation2], %s311
        %p313 = pneg %p64
        %p314 = pneg %p61
        %s315 = sand.u32 %s29, 1
        %s316 = scalar_lea.sflag [#allocation6], %s315
        %s317 = sand.u32 %s77, 1
        %s318 = smul.addr %s317, 8
        %s319 = scalar_lea.vmem [#allocation5], %s318
        %p320 = pneg %p90
        %p321 = pneg %p87
        %s322 = sand.u32 %s29, 1
        %s323 = scalar_lea.sflag [#allocation6], %s322
        %s324 = sand.u32 %s103, 1
        %s325 = smul.addr %s324, 8
        %s326 = scalar_lea.vmem [#allocation7], %s325
        %p327 = pneg %p116
        %p328 = pneg %p113
        %p329 = pneg %p144
        %p330 = pneg %p141
        %s331 = sand.u32 %s131, 1
        %s332 = scalar_lea.sflag [#allocation4], %s331
        %s333 = sand.u32 %s131, 1
        %s334 = smul.addr %s333, 8
        %s335 = scalar_lea.vmem [#allocation8], %s334
        %p336 = pneg %p172
        %p337 = pneg %p169
        %s338 = sand.u32 %s29, 1
        %s339 = scalar_lea.sflag [#allocation10], %s338
        %s340 = sand.u32 %s159, 1
        %s341 = smul.addr %s340, 8
        %s342 = scalar_lea.vmem [#allocation9], %s341
        %p343 = pneg %p200
        %p344 = pneg %p197
        %s345 = sand.u32 %s29, 1
        %s346 = scalar_lea.sflag [#allocation10], %s345
        %s347 = sand.u32 %s187, 1
        %s348 = smul.addr %s347, 8
        %s349 = scalar_lea.vmem [#allocation11], %s348
        %v350 = vld [vmem:[%s285] sm:$0xff]
        %v351 = vld [vmem:[%s294] sm:$0xff]
        %vm352 = vcmask 261120
        %v354 = vsel %vm352, %v350, 0
        %v357 = vsel %vm352, %v351, 0
        %359 = vmatprep.subr.mxu0 0.0
        %360 = vmatpush1.xpose.msra.mxu0 0.0
        %361 = vmatprep.subr.mxu0 0.0
        %362 = vmatpush1.xpose.msra.mxu0 0.0
        %363 = vmatprep.subr.mxu0 0.0
        %364 = vmatpush1.xpose.msra.mxu0 0.0
        %365 = vmatprep.subr.mxu0 0.0
        %366 = vmatpush1.xpose.msra.mxu0 0.0
        %367 = vmatprep.subr.mxu0 0.0
        %368 = vmatpush1.xpose.msra.mxu0 0.0
        %369 = vmatprep.subr.mxu0 0.0
        %370 = vmatpush1.xpose.msra.mxu0 0.0
        %371 = vmatprep.subr.mxu0 0.0
        %372 = vmatpush1.xpose.msra.mxu0 0.0
        %373 = vmatprep.subr.mxu0 0.0
        %374 = vmatpush1.xpose.msra.mxu0 0.0
        %375 = vmatprep.subr.mxu0 0.0
        %376 = vmatpush1.xpose.msra.mxu0 0.0
        %377 = vmatprep.subr.mxu0 0.0
        %378 = vmatpush1.xpose.msra.mxu0 0.0
        %379 = vmatprep.subr.mxu0 0.0
        %380 = vmatpush1.xpose.msra.mxu0 0.0
        %381 = vmatprep.subr.mxu0 0.0
        %382 = vmatpush1.xpose.msra.mxu0 0.0
        %383 = vmatprep.subr.mxu0 0.0
        %384 = vmatpush1.xpose.msra.mxu0 0.0
        %385 = vmatprep.subr.mxu0 0.0
        %386 = vmatpush1.xpose.msra.mxu0 0.0
        %387 = vmatprep.subr.mxu0 0.0
        %388 = vmatpush1.xpose.msra.mxu0 0.0
        %389 = vmatprep.subr.mxu0 0.0
        %390 = vmatpush1.xpose.msra.mxu0 %v357
        %391 = vmatprep.subr.mxu0 0.0
        %392 = vmatpush2.xpose.msra.mxu0 0.0
        %393 = vmatprep.subr.mxu0 0.0
        %394 = vmatpush2.xpose.msra.mxu0 0.0
        %395 = vmatprep.subr.mxu0 0.0
        %396 = vmatpush2.xpose.msra.mxu0 0.0
        %397 = vmatprep.subr.mxu0 0.0
        %398 = vmatpush2.xpose.msra.mxu0 0.0
        %399 = vmatprep.subr.mxu0 0.0
        %400 = vmatpush2.xpose.msra.mxu0 0.0
        %401 = vmatprep.subr.mxu0 0.0
        %402 = vmatpush2.xpose.msra.mxu0 0.0
        %403 = vmatprep.subr.mxu0 0.0
        %404 = vmatpush2.xpose.msra.mxu0 0.0
        %405 = vmatprep.subr.mxu0 0.0
        %406 = vmatpush2.xpose.msra.mxu0 0.0
        %407 = vmatprep.subr.mxu0 0.0
        %408 = vmatpush2.xpose.msra.mxu0 0.0
        %409 = vmatprep.subr.mxu0 0.0
        %410 = vmatpush2.xpose.msra.mxu0 0.0
        %411 = vmatprep.subr.mxu0 0.0
        %412 = vmatpush2.xpose.msra.mxu0 0.0
        %413 = vmatprep.subr.mxu0 0.0
        %414 = vmatpush2.xpose.msra.mxu0 0.0
        %415 = vmatprep.subr.mxu0 0.0
        %416 = vmatpush2.xpose.msra.mxu0 0.0
        %417 = vmatprep.subr.mxu0 0.0
        %418 = vmatpush2.xpose.msra.mxu0 0.0
        %419 = vmatprep.subr.mxu0 0.0
        %420 = vmatpush2.xpose.msra.mxu0 0.0
        %421 = vmatprep.subr.mxu0 0.0
        %422 = vmatpush2.xpose.msra.mxu0 0.0
        %423 = vmatprep.mubr.f32.mxu0 0.0
        %424 = vmatmul.mubr.f32.gmra.mxu0 %v354
        %v425 = vpop.f32.mrf.mxu0
        %v426 = vadd.f32 0.0, %v425
        %v427 = vpop.f32.mrf.mxu0
        %428 = vdwg.mxu0
        %v429 = vmul.f32 %v426, 0.17677669
        %vm430 = vcmask 64512
        %v431 = vsel %vm430, %v429, -inf
        %432 = vmax.xlane.f32.xlu0 %v431
        %v433 = vpop.xlane.xlu0 %432
        %v434 = vsub.f32 %v429, %v433
        %v435 = vmul.f32 %v434, 1.442695
        %v436 = vpow.pop %v435
        %v437 = vsel %vm430, %v436, 0.0
        %438 = vadd.xlane.f32.xlu0 %v437
        %v439 = vpop.xlane.xlu0 %438
        %v440 = vrcp.pop %v439
        %v441 = vmul.f32 %v436, %v440
        %v442 = vlog2.pop %v439
        %v443 = vmul.f32 %v442, 0.6931472
        %v444 = vsub.f32 %v434, %v443
        %v445 = vld [vmem:[%s303] sm:$0xff]
        %v447 = vsel %vm430, %v441, 0
        %449 = vmatprep.subr.mxu0 0.0
        %450 = vmatpush1.msra.mxu0 0.0
        %451 = vmatprep.subr.mxu0 0.0
        %452 = vmatpush1.msra.mxu0 0.0
        %453 = vmatprep.subr.mxu0 0.0
        %454 = vmatpush1.msra.mxu0 0.0
        %455 = vmatprep.subr.mxu0 0.0
        %456 = vmatpush1.msra.mxu0 0.0
        %457 = vmatprep.subr.mxu0 0.0
        %458 = vmatpush1.msra.mxu0 0.0
        %459 = vmatprep.subr.mxu0 0.0
        %460 = vmatpush1.msra.mxu0 0.0
        %461 = vmatprep.subr.mxu0 0.0
        %462 = vmatpush1.msra.mxu0 0.0
        %463 = vmatprep.subr.mxu0 0.0
        %464 = vmatpush1.msra.mxu0 0.0
        %465 = vmatprep.subr.mxu0 0.0
        %466 = vmatpush1.msra.mxu0 0.0
        %467 = vmatprep.subr.mxu0 0.0
        %468 = vmatpush1.msra.mxu0 0.0
        %469 = vmatprep.subr.mxu0 0.0
        %470 = vmatpush1.msra.mxu0 0.0
        %471 = vmatprep.subr.mxu0 0.0
        %472 = vmatpush1.msra.mxu0 0.0
        %473 = vmatprep.subr.mxu0 0.0
        %474 = vmatpush1.msra.mxu0 0.0
        %475 = vmatprep.subr.mxu0 0.0
        %476 = vmatpush1.msra.mxu0 0.0
        %477 = vmatprep.subr.mxu0 0.0
        %478 = vmatpush1.msra.mxu0 0.0
        %479 = vmatprep.subr.mxu0 0.0
        %480 = vmatpush1.msra.mxu0 %v445
        %481 = vmatprep.subr.mxu0 0.0
        %482 = vmatpush2.msra.mxu0 0.0
        %483 = vmatprep.subr.mxu0 0.0
        %484 = vmatpush2.msra.mxu0 0.0
        %485 = vmatprep.subr.mxu0 0.0
        %486 = vmatpush2.msra.mxu0 0.0
        %487 = vmatprep.subr.mxu0 0.0
        %488 = vmatpush2.msra.mxu0 0.0
        %489 = vmatprep.subr.mxu0 0.0
        %490 = vmatpush2.msra.mxu0 0.0
        %491 = vmatprep.subr.mxu0 0.0
        %492 = vmatpush2.msra.mxu0 0.0
        %493 = vmatprep.subr.mxu0 0.0
        %494 = vmatpush2.msra.mxu0 0.0
        %495 = vmatprep.subr.mxu0 0.0
        %496 = vmatpush2.msra.mxu0 0.0
        %497 = vmatprep.subr.mxu0 0.0
        %498 = vmatpush2.msra.mxu0 0.0
        %499 = vmatprep.subr.mxu0 0.0
        %500 = vmatpush2.msra.mxu0 0.0
        %501 = vmatprep.subr.mxu0 0.0
        %502 = vmatpush2.msra.mxu0 0.0
        %503 = vmatprep.subr.mxu0 0.0
        %504 = vmatpush2.msra.mxu0 0.0
        %505 = vmatprep.subr.mxu0 0.0
        %506 = vmatpush2.msra.mxu0 0.0
        %507 = vmatprep.subr.mxu0 0.0
        %508 = vmatpush2.msra.mxu0 0.0
        %509 = vmatprep.subr.mxu0 0.0
        %510 = vmatpush2.msra.mxu0 0.0
        %511 = vmatprep.subr.mxu0 0.0
        %512 = vmatpush2.msra.mxu0 0.0
        %513 = vmatprep.mubr.f32.mxu0 0.0
        %514 = vmatmul.mubr.f32.gmra.mxu0 %v447
        %v515 = vpop.f32.mrf.mxu0
        %v516 = vadd.f32 0.0, %v515
        %v517 = vpop.f32.mrf.mxu0
        %518 = vdwg.mxu0
        %519 = vst.msk [vmem:[%s335] sm:$0xff] %vm352, %v516
        %520 = vst.msk [vmem:[%s342] sm:$0xff] %vm430, %v441
        %521 = vst.msk [vmem:[%s349] sm:$0xff] %vm430, %v444
        %s522 = sand.u32 %s131, 1
        %s523 = scalar_lea.sflag [#allocation4], %s522
        %s524 = sand.u32 %s131, 1
        %s525 = smul.addr %s524, 8
        %s526 = scalar_lea.vmem [#allocation8], %s525
        %s527 = sand.u32 %s29, 1
        %s528 = scalar_lea.sflag [#allocation10], %s527
        %s529 = sand.u32 %s159, 1
        %s530 = smul.addr %s529, 8
        %s531 = scalar_lea.vmem [#allocation9], %s530
        %s532 = sand.u32 %s29, 1
        %s533 = scalar_lea.sflag [#allocation10], %s532
        %s534 = sand.u32 %s187, 1
        %s535 = smul.addr %s534, 8
        %s536 = scalar_lea.vmem [#allocation11], %s535
        // Predicated region
        $region45: #{tpu_custom_call.1} parent=31 // pred_check
          %p537 = pneg %p141
        $region46: #{tpu_custom_call.1} parent=31 // pred_check_branch
          %539 = sbr.rel (%p537) target = $region48
        $region47: #{tpu_custom_call.1} parent=31 // pred_region
          %s541 = ssub.s32 128, 128
          %542 = vsyncadd %s523, %s541
          %s543 = sadd.s32 %s34, %s33
          %s544 = smul.addr %s543, 128
          %s545 = scalar_lea.hbm %s3, %s544
          %s547 = sshll.u32 %s526, 4
          %s548 = int_to_ptr.vmem [resolvable:$true] %s547
          %550 = dma.vmem_to_hbm [thread:$0]  %s548, 128, %s545, %s523
        $region48: #{tpu_custom_call.1} parent=31 // pred_fallthru
          _
        // Predicated region
        $region49: #{tpu_custom_call.1} parent=31 // pred_check
          %p551 = pneg %p169
        $region50: #{tpu_custom_call.1} parent=31 // pred_check_branch
          %553 = sbr.rel (%p551) target = $region52
        $region51: #{tpu_custom_call.1} parent=31 // pred_region
          %s555 = ssub.s32 128, 128
          %556 = vsyncadd %s528, %s555
          %s557 = sadd.s32 %s34, %s33
          %s558 = smul.addr %s557, 128
          %s559 = scalar_lea.hbm %s4, %s558
          %s561 = sshll.u32 %s531, 4
          %s562 = int_to_ptr.vmem [resolvable:$true] %s561
          %564 = dma.vmem_to_hbm [thread:$0]  %s562, 128, %s559, %s528
        $region52: #{tpu_custom_call.1} parent=31 // pred_fallthru
          _
        // Predicated region
        $region53: #{tpu_custom_call.1} parent=31 // pred_check
          %p565 = pneg %p197
        $region54: #{tpu_custom_call.1} parent=31 // pred_check_branch
          %567 = sbr.rel (%p565) target = $region56
        $region55: #{tpu_custom_call.1} parent=31 // pred_region
          %s569 = ssub.s32 128, 128
          %570 = vsyncadd %s533, %s569
          %s571 = sadd.s32 %s34, %s33
          %s572 = smul.addr %s571, 128
          %s573 = scalar_lea.hbm %s5, %s572
          %s575 = sshll.u32 %s536, 4
          %s576 = int_to_ptr.vmem [resolvable:$true] %s575
          %578 = dma.vmem_to_hbm [thread:$0]  %s576, 128, %s573, %s533
        $region56: #{tpu_custom_call.1} parent=31 // pred_fallthru
          _
      $region32: #{tpu_custom_call.1} parent=5 // pred_fallthru
        _
      %p579 = scmp.le.s32.totalorder 2, %s24
      // Predicated region
      $region57: #{tpu_custom_call.1} parent=5 // pred_check
        %p580 = pneg %p579
      $region58: #{tpu_custom_call.1} parent=5 // pred_check_branch
        %582 = sbr.rel (%p580) target = $region60
      $region59: #{tpu_custom_call.1} parent=5 // pred_region
        %s583 = ssub.s32 %s24, 2
        // Predicated region
        $region61: #{tpu_custom_call.1} parent=59 // pred_check
          %p584 = pneg %p147
        $region62: #{tpu_custom_call.1} parent=59 // pred_check_branch
          %586 = sbr.rel (%p584) target = $region64
        $region63: #{tpu_custom_call.1} parent=59 // pred_region
          %s587 = sand.u32 %s132, 1
          %s588 = scalar_lea.sflag [#allocation4], %s587
          %s589 = sand.u32 %s132, 1
          %s590 = smul.addr %s589, 8
          %s591 = scalar_lea.vmem [#allocation8], %s590
          %592 = dma.done %s588, 128
        $region64: #{tpu_custom_call.1} parent=59 // pred_fallthru
          _
        // Predicated region
        $region65: #{tpu_custom_call.1} parent=59 // pred_check
          %p593 = pneg %p175
        $region66: #{tpu_custom_call.1} parent=59 // pred_check_branch
          %595 = sbr.rel (%p593) target = $region68
        $region67: #{tpu_custom_call.1} parent=59 // pred_region
          %s596 = sand.u32 %s30, 1
          %s597 = scalar_lea.sflag [#allocation10], %s596
          %s598 = sand.u32 %s160, 1
          %s599 = smul.addr %s598, 8
          %s600 = scalar_lea.vmem [#allocation9], %s599
          %601 = dma.done %s597, 128
        $region68: #{tpu_custom_call.1} parent=59 // pred_fallthru
          _
        // Predicated region
        $region69: #{tpu_custom_call.1} parent=59 // pred_check
          %p602 = pneg %p203
        $region70: #{tpu_custom_call.1} parent=59 // pred_check_branch
          %604 = sbr.rel (%p602) target = $region72
        $region71: #{tpu_custom_call.1} parent=59 // pred_region
          %s605 = sand.u32 %s30, 1
          %s606 = scalar_lea.sflag [#allocation10], %s605
          %s607 = sand.u32 %s188, 1
          %s608 = smul.addr %s607, 8
          %s609 = scalar_lea.vmem [#allocation11], %s608
          %610 = dma.done %s606, 128
        $region72: #{tpu_custom_call.1} parent=59 // pred_fallthru
          _
      $region60: #{tpu_custom_call.1} parent=5 // pred_fallthru
        _
    $region6: #{tpu_custom_call.1} parent=1 // loop_footer
      %s28 = sadd.s32 1, %s24
    $region7: #{tpu_custom_call.1} parent=1 // loop_footer_branch
      %23 = sbr.rel target = $region3
    $region8: #{tpu_custom_call.1} parent=1 // loop_exit
      _
    %611 = vsyncpa [#allocation3], 1
    %s612 = scalar_lea.sflag [#allocation3], 1
    %613 = vsyncpa %s612, 1
    %614 = vsyncpa [#allocation6], 1
    %s615 = scalar_lea.sflag [#allocation6], 1
    %616 = vsyncpa %s615, 1
    %617 = vsyncpa [#allocation4], 1
    %s618 = scalar_lea.sflag [#allocation4], 1
    %619 = vsyncpa %s618, 1
    %620 = vsyncpa [#allocation10], 1
    %s621 = scalar_lea.sflag [#allocation10], 1
    %622 = vsyncpa %s621, 1

</llo_original>
